<compile_context>
chip_gen: v6e
topology: v6e:2x2x1
jax: 0.10.0
libtpu: 0.0.40
codegen_flags: <defaults>
</compile_context>

<pallas_src>
import math

import jax
import jax.numpy as jnp
from jax.experimental import pallas as pl
from jax.experimental.pallas import tpu as pltpu


_TARGET_BLOCK_BYTES = 1 << 20   # ~1 MiB of x per block (double-buffered in + out)
_MAX_S_BLOCK = 512              # rows; multiple of 8/16/32 -> any dtype sublane-aligned
_VMEM_LIMIT_BYTES = 32 * 1024 * 1024


# ----------------------------------------------------------------------------
# Cache construction (mirrors the PyTorch __init__, plus the expanded tables the
# fused kernel consumes).
# ----------------------------------------------------------------------------
def make_rope_cache(theta: float, d_k: int, max_seq_len: int):
    """Returns (cos_exp, sin_e, sin_o, cos_raw, sin_raw).

    cos_raw/sin_raw: (max_seq_len, d_k//2)  -- same as the PyTorch buffers.
    cos_exp:         (max_seq_len, d_k)     cos_exp[:, 2i] = cos_exp[:, 2i+1] = cos_i
    sin_e:           (max_seq_len, d_k)     sin_e[:, 2i]   = -sin_i, sin_e[:, 2i+1] = 0
    sin_o:           (max_seq_len, d_k)     sin_o[:, 2i]   = 0,      sin_o[:, 2i+1] = +sin_i
    so that   out = x*cos_exp + roll(x,-1)*sin_e + roll(x,+1)*sin_o
    reproduces the interleaved rotation with no parity select in the kernel.
    """
    assert d_k % 2 == 0
    inv_freq = 1.0 / theta ** (jnp.arange(0, d_k, 2, dtype=jnp.float32) / d_k)
    pos = jnp.arange(max_seq_len, dtype=jnp.float32)[:, None]          # (L, 1)
    angles = pos * inv_freq[None, :]                                   # (L, d_k/2)
    cos_raw = jnp.cos(angles)
    sin_raw = jnp.sin(angles)
    zeros = jnp.zeros_like(sin_raw)
    cos_exp = jnp.repeat(cos_raw, 2, axis=-1)                          # (L, d_k)
    sin_e = jnp.stack([-sin_raw, zeros], axis=-1).reshape(max_seq_len, d_k)
    sin_o = jnp.stack([zeros, sin_raw], axis=-1).reshape(max_seq_len, d_k)
    return cos_exp, sin_e, sin_o, cos_raw, sin_raw


# ----------------------------------------------------------------------------
# Pallas kernel: fused rotation on interleaved (even, odd) feature pairs.
# ----------------------------------------------------------------------------
def _rope_kernel(x_ref, cos_ref, sine_ref, sino_ref, o_ref):
    x = x_ref[...].astype(jnp.float32)        # (Bblk, Sblk, D); f32 in vregs only
    d = x.shape[-1]

    # Neighbour views along the lane axis (XLU rolls; wrap-around lanes are
    # multiplied by the zeros baked into sin_e / sin_o, so they never leak):
    #   fwd[..., j] = x[..., (j+1) % d]   (pairs with sin_e, nonzero at even j)
    #   bwd[..., j] = x[..., (j-1) % d]   (pairs with sin_o, nonzero at odd  j)
    fwd = pltpu.roll(x, shift=d - 1, axis=2)
    bwd = pltpu.roll(x, shift=1, axis=2)

    out = (x * cos_ref[...][None]
           + fwd * sine_ref[...][None]
           + bwd * sino_ref[...][None])
    o_ref[...] = out.astype(o_ref.dtype)


def _rope_pallas(x, cos_exp, sin_e, sin_o):
    """x: (B, S, D) any float dtype; cos_exp/sin_e/sin_o: (S, D) float32."""
    B, S, D = x.shape
    assert cos_exp.shape == (S, D) and sin_e.shape == (S, D) and sin_o.shape == (S, D)

    itemsize = x.dtype.itemsize
    # Fixed-size S tile (multiple of 8/16/32 -> sublane-aligned for any dtype),
    # or the full axis when shorter (always a legal block shape).  pl.cdiv
    # grids handle ragged tails, so VMEM is bounded for arbitrary S.
    s_blk = S if S <= _MAX_S_BLOCK else _MAX_S_BLOCK
    row_bytes = s_blk * D * itemsize
    b_blk = max(1, min(B, _TARGET_BLOCK_BYTES // max(1, row_bytes)))
    grid = (pl.cdiv(S, s_blk), pl.cdiv(B, b_blk))      # S outer, B inner

    # x/out blocks change every step; cos/sin blocks depend only on the OUTER
    # (S) axis, so Pallas skips their DMA across the inner B iterations and the
    # tables stay VMEM-resident -> x dominates HBM traffic.
    x_spec = pl.BlockSpec((b_blk, s_blk, D), lambda s, b: (b, s, 0))
    t_spec = pl.BlockSpec((s_blk, D), lambda s, b: (s, 0))

    return pl.pallas_call(
        _rope_kernel,
        out_shape=jax.ShapeDtypeStruct((B, S, D), x.dtype),
        grid_spec=pltpu.PrefetchScalarGridSpec(
            num_scalar_prefetch=0,
            grid=grid,
            in_specs=[x_spec, t_spec, t_spec, t_spec],
            out_specs=x_spec,
        ),
        compiler_params=pltpu.CompilerParams(
            dimension_semantics=("parallel", "parallel"),
            vmem_limit_bytes=_VMEM_LIMIT_BYTES,
        ),
    )(x, cos_exp, sin_e, sin_o)


# ----------------------------------------------------------------------------
# Forward wrapper: reproduces RotaryPositionEmbedding.forward semantics.
# ----------------------------------------------------------------------------
def rope_forward(x, cos_exp, sin_e, sin_o, token_positions=None):
    """x: (..., seq_len, d_k) in its native dtype (f32/bf16 both supported).

    token_positions: optional shared 1-D (seq_len,) int array.
    """
    *lead, S, D = x.shape
    assert D == cos_exp.shape[-1]
    B = int(math.prod(lead)) if lead else 1
    xr = x.reshape(B, S, D)  # free reshape; dtype preserved (no f32 HBM round-trip)

    if token_positions is None:
        # Default path: static slice of the cache, no XLA gather kernel.
        cos = jax.lax.slice_in_dim(cos_exp, 0, S, axis=0)
        se = jax.lax.slice_in_dim(sin_e, 0, S, axis=0)
        so = jax.lax.slice_in_dim(sin_o, 0, S, axis=0)
    else:
        # TODO(synk): per-batch token_positions of shape (..., seq_len) not
        # supported (only a shared 1-D vector); positions >= max_seq_len are
        # clamped by XLA gather semantics rather than raising.
        assert token_positions.ndim == 1
        cos = cos_exp[token_positions]
        se = sin_e[token_positions]
        so = sin_o[token_positions]

    out = _rope_pallas(xr, cos, se, so)
    return out.reshape(*lead, S, D)


# Pure-JAX reference (mirrors the PyTorch forward exactly, using the raw cache).
def rope_reference(x, cos_raw, sin_raw, token_positions=None):
    *lead, S, D = x.shape
    if token_positions is None:
        token_positions = jnp.arange(S)
    cos = cos_raw[token_positions]
    sin = sin_raw[token_positions]
    xp = x.reshape(*lead, S, D // 2, 2)
    x1, x2 = xp[..., 0], xp[..., 1]
    out = jnp.stack([x1 * cos - x2 * sin, x1 * sin + x2 * cos], axis=-1)
    return out.reshape(*lead, S, D)


if __name__ == "__main__":
    theta = 10000.0
    d_k = 128            # lane-dense head dim (multiple of 128)
    max_seq_len = 32
    batch, n_heads, seq = 2, 4, 16

    cos_exp, sin_e, sin_o, cos_raw, sin_raw = make_rope_cache(theta, d_k, max_seq_len)

    key = jax.random.PRNGKey(0)
    x = jax.random.normal(key, (batch, n_heads, seq, d_k), dtype=jnp.float32)

    # Default positions (arange) path.
    out = jax.block_until_ready(rope_forward(x, cos_exp, sin_e, sin_o))
    ref = rope_reference(x, cos_raw, sin_raw)
    assert out.shape == x.shape and out.dtype == x.dtype
    assert jnp.allclose(out, ref, atol=1e-5, rtol=1e-5)

    # Explicit shared 1-D token_positions path.
    pos = jnp.arange(seq) + 3
    out_p = jax.block_until_ready(
        rope_forward(x, cos_exp, sin_e, sin_o, token_positions=pos))
    ref_p = rope_reference(x, cos_raw, sin_raw, token_positions=pos)
    assert jnp.allclose(out_p, ref_p, atol=1e-5, rtol=1e-5)

    # Native bf16 I/O path (compute stays f32 inside the kernel).
    xb = x.astype(jnp.bfloat16)
    out_b = jax.block_until_ready(rope_forward(xb, cos_exp, sin_e, sin_o))
    ref_b = rope_reference(xb, cos_raw, sin_raw).astype(jnp.bfloat16)
    assert out_b.dtype == jnp.bfloat16
    assert jnp.allclose(out_b.astype(jnp.float32), ref_b.astype(jnp.float32),
                        atol=3e-2, rtol=3e-2)

    print("KERNEL_OK")
</pallas_src>

<mosaic_0001>
module attributes {stable_mosaic.version = 11 : i64} {
  func.func @_rope_kernel(%arg0: i32, %arg1: i32, %arg2: memref<8x16x128xf32, #tpu.memory_space<vmem>>, %arg3: memref<16x128xf32, #tpu.memory_space<vmem>>, %arg4: memref<16x128xf32, #tpu.memory_space<vmem>>, %arg5: memref<16x128xf32, #tpu.memory_space<vmem>>, %arg6: memref<8x16x128xf32, #tpu.memory_space<vmem>>) attributes {dimension_semantics = [#tpu.dimension_semantics<parallel>, #tpu.dimension_semantics<parallel>], iteration_bounds = array<i64: 1, 1>, scalar_prefetch = 0 : i64, scratch_operands = 0 : i64, tpu.core_type = #tpu.core_type<tc>, window_params = [{transform_indices = @transform_0, window_bounds = array<i64: 8, 16, 128>}, {transform_indices = @transform_1, window_bounds = array<i64: 16, 128>}, {transform_indices = @transform_2, window_bounds = array<i64: 16, 128>}, {transform_indices = @transform_3, window_bounds = array<i64: 16, 128>}, {transform_indices = @transform_4, window_bounds = array<i64: 8, 16, 128>}]} {
    %c0 = arith.constant 0 : index
    %c0_0 = arith.constant 0 : index
    %c0_1 = arith.constant 0 : index
    %0 = vector.load %arg2[%c0, %c0_0, %c0_1] : memref<8x16x128xf32, #tpu.memory_space<vmem>>, vector<8x16x128xf32>
    %c127_i32 = arith.constant 127 : i32
    %1 = tpu.dynamic_rotate %0 by %c127_i32 dim 2 : vector<8x16x128xf32>, i32 -> vector<8x16x128xf32>
    %c1_i32 = arith.constant 1 : i32
    %2 = tpu.dynamic_rotate %0 by %c1_i32 dim 2 : vector<8x16x128xf32>, i32 -> vector<8x16x128xf32>
    %c0_2 = arith.constant 0 : index
    %c0_3 = arith.constant 0 : index
    %3 = vector.load %arg3[%c0_2, %c0_3] : memref<16x128xf32, #tpu.memory_space<vmem>>, vector<16x128xf32>
    %4 = vector.shape_cast %3 : vector<16x128xf32> to vector<1x16x128xf32>
    %5 = vector.broadcast %4 : vector<1x16x128xf32> to vector<8x16x128xf32>
    %6 = arith.mulf %0, %5 : vector<8x16x128xf32>
    %c0_4 = arith.constant 0 : index
    %c0_5 = arith.constant 0 : index
    %7 = vector.load %arg4[%c0_4, %c0_5] : memref<16x128xf32, #tpu.memory_space<vmem>>, vector<16x128xf32>
    %8 = vector.shape_cast %7 : vector<16x128xf32> to vector<1x16x128xf32>
    %9 = vector.broadcast %8 : vector<1x16x128xf32> to vector<8x16x128xf32>
    %10 = arith.mulf %1, %9 : vector<8x16x128xf32>
    %11 = arith.addf %6, %10 : vector<8x16x128xf32>
    %c0_6 = arith.constant 0 : index
    %c0_7 = arith.constant 0 : index
    %12 = vector.load %arg5[%c0_6, %c0_7] : memref<16x128xf32, #tpu.memory_space<vmem>>, vector<16x128xf32>
    %13 = vector.shape_cast %12 : vector<16x128xf32> to vector<1x16x128xf32>
    %14 = vector.broadcast %13 : vector<1x16x128xf32> to vector<8x16x128xf32>
    %15 = arith.mulf %2, %14 : vector<8x16x128xf32>
    %16 = arith.addf %11, %15 : vector<8x16x128xf32>
    %c0_8 = arith.constant 0 : index
    %c0_9 = arith.constant 0 : index
    %c0_10 = arith.constant 0 : index
    %17 = vector.load %arg6[%c0_8, %c0_9, %c0_10] : memref<8x16x128xf32, #tpu.memory_space<vmem>>, vector<8x16x128xf32>
    tpu.vector_store %arg6[%c0_8, %c0_9, %c0_10], %16 {strides = array<i32>} : memref<8x16x128xf32, #tpu.memory_space<vmem>>, vector<8x16x128xf32>,
    return
  }
  func.func @transform_0(%arg0: i32, %arg1: i32) -> (i32, i32, i32) {
    %c0_i32 = arith.constant 0 : i32
    %c0_i32_0 = arith.constant 0 : i32
    return %arg1, %arg0, %c0_i32 : i32, i32, i32
  }
  func.func @transform_1(%arg0: i32, %arg1: i32) -> (i32, i32) {
    %c0_i32 = arith.constant 0 : i32
    %c0_i32_0 = arith.constant 0 : i32
    return %arg0, %c0_i32 : i32, i32
  }
  func.func @transform_2(%arg0: i32, %arg1: i32) -> (i32, i32) {
    %c0_i32 = arith.constant 0 : i32
    %c0_i32_0 = arith.constant 0 : i32
    return %arg0, %c0_i32 : i32, i32
  }
  func.func @transform_3(%arg0: i32, %arg1: i32) -> (i32, i32) {
    %c0_i32 = arith.constant 0 : i32
    %c0_i32_0 = arith.constant 0 : i32
    return %arg0, %c0_i32 : i32, i32
  }
  func.func @transform_4(%arg0: i32, %arg1: i32) -> (i32, i32, i32) {
    %c0_i32 = arith.constant 0 : i32
    %c0_i32_0 = arith.constant 0 : i32
    return %arg1, %arg0, %c0_i32 : i32, i32, i32
  }
}

</mosaic_0001>

<llo_original>
// kernel: tpu_custom_call.1
$region0: #{tpu_custom_call.1}
  #allocation0 [shape = 'u32[]', space=smem, size = 0x4, offset = 0x4, fixed_abs, tag = 'smem constant byte address 0x4 - core index']
  #allocation1 [shape = 'u32[144,128]{1,0:T(1,128)}', space=vmem, size = 0x12000, scoped, tag = 'internal scratch']
  %s0 = inlined_call_operand.hbm [shape: f32[8,16,128], index: 0, kind: input, shape index: {}]
  %s1 = inlined_call_operand.hbm [shape: f32[16,128], index: 1, kind: input, shape index: {}]
  %s2 = inlined_call_operand.hbm [shape: f32[16,128], index: 2, kind: input, shape index: {}]
  %s3 = inlined_call_operand.hbm [shape: f32[16,128], index: 3, kind: input, shape index: {}]
  %s4 = inlined_call_operand.hbm [shape: f32[8,16,128], index: 4, kind: output, shape index: {}]
  %s5 = sld [smem:[#allocation0]]
  $region42: #{tpu_custom_call.1} parent=0
    _
  %s7 = ssub.s32 1, %s5
  %s8 = scalar_select 0, %s7, %s5
  $region1: #{tpu_custom_call.1} parent=0
    #allocation2 [shape = 'u8[65536]{0}', space=vmem, size = 0x10000, scoped, tag = 'input window, operand 0, single buffered']
    #allocation3 [shape = 's32[1]{0}', space=sflag, size = 0x4, scoped, tag = 'scoped memory for tpu_custom_call.1']
    #allocation4 [shape = 's32[1]{0}', space=sflag, size = 0x4, scoped, tag = 'scoped memory for tpu_custom_call.1']
    #allocation5 [shape = 'u8[8192]{0}', space=vmem, size = 0x2000, scoped, tag = 'input window, operand 1, single buffered']
    #allocation6 [shape = 's32[1]{0}', space=sflag, size = 0x4, scoped, tag = 'scoped memory for tpu_custom_call.1']
    #allocation7 [shape = 'u8[8192]{0}', space=vmem, size = 0x2000, scoped, tag = 'input window, operand 2, single buffered']
    #allocation8 [shape = 'u8[8192]{0}', space=vmem, size = 0x2000, scoped, tag = 'input window, operand 3, single buffered']
    #allocation9 [shape = 's32[1]{0}', space=sflag, size = 0x4, scoped, tag = 'scoped memory for tpu_custom_call.1']
    #allocation10 [shape = 'u8[65536]{0}', space=vmem, size = 0x10000, scoped, tag = 'output window, operand 0, single buffered']
    %9 = vsyncpa [#allocation3], 0
    %10 = vsyncpa [#allocation6], 0
    %11 = vsyncpa [#allocation9], 0
    %12 = vsyncpa [#allocation4], 0
    // Predicated region
    $region2: #{tpu_custom_call.1} parent=1 // pred_check
      _
    $region3: #{tpu_custom_call.1} parent=1 // pred_check_branch
      %14 = sbr.rel (0) target = $region5
    $region4: #{tpu_custom_call.1} parent=1 // pred_region
      %s16 = ssub.s32 2048, 2048
      %17 = vsyncadd [#allocation3], %s16
      %s18 = sshll.u32 [#allocation2], 4
      %s19 = int_to_ptr.vmem [resolvable:$true] %s18
      %24 = dma.hbm_to_vmem [thread:$0]  %s0, 2048, %s19, [#allocation3], 128, 128, 8
    $region5: #{tpu_custom_call.1} parent=1 // pred_fallthru
      _
    // Predicated region
    $region6: #{tpu_custom_call.1} parent=1 // pred_check
      _
    $region7: #{tpu_custom_call.1} parent=1 // pred_check_branch
      %26 = sbr.rel (0) target = $region9
    $region8: #{tpu_custom_call.1} parent=1 // pred_region
      %s28 = ssub.s32 256, 256
      %29 = vsyncadd [#allocation6], %s28
      %s30 = sshll.u32 [#allocation5], 4
      %s31 = int_to_ptr.vmem [resolvable:$true] %s30
      %36 = dma.hbm_to_vmem [thread:$0]  %s1, 256, %s31, [#allocation6], 128, 128, 8
    $region9: #{tpu_custom_call.1} parent=1 // pred_fallthru
      _
    // Predicated region
    $region10: #{tpu_custom_call.1} parent=1 // pred_check
      _
    $region11: #{tpu_custom_call.1} parent=1 // pred_check_branch
      %38 = sbr.rel (0) target = $region13
    $region12: #{tpu_custom_call.1} parent=1 // pred_region
      %s40 = ssub.s32 256, 256
      %41 = vsyncadd [#allocation6], %s40
      %s42 = sshll.u32 [#allocation7], 4
      %s43 = int_to_ptr.vmem [resolvable:$true] %s42
      %48 = dma.hbm_to_vmem [thread:$0]  %s2, 256, %s43, [#allocation6], 128, 128, 8
    $region13: #{tpu_custom_call.1} parent=1 // pred_fallthru
      _
    // Predicated region
    $region14: #{tpu_custom_call.1} parent=1 // pred_check
      _
    $region15: #{tpu_custom_call.1} parent=1 // pred_check_branch
      %50 = sbr.rel (0) target = $region17
    $region16: #{tpu_custom_call.1} parent=1 // pred_region
      %s52 = ssub.s32 256, 256
      %53 = vsyncadd [#allocation9], %s52
      %s54 = sshll.u32 [#allocation8], 4
      %s55 = int_to_ptr.vmem [resolvable:$true] %s54
      %60 = dma.hbm_to_vmem [thread:$0]  %s3, 256, %s55, [#allocation9], 128, 128, 8
    $region17: #{tpu_custom_call.1} parent=1 // pred_fallthru
      _
    // Predicated region
    $region18: #{tpu_custom_call.1} parent=1 // pred_check
      _
    $region19: #{tpu_custom_call.1} parent=1 // pred_check_branch
      %62 = sbr.rel (0) target = $region21
    $region20: #{tpu_custom_call.1} parent=1 // pred_region
      %63 = dma.done [#allocation3], 2048
    $region21: #{tpu_custom_call.1} parent=1 // pred_fallthru
      _
    // Predicated region
    $region22: #{tpu_custom_call.1} parent=1 // pred_check
      _
    $region23: #{tpu_custom_call.1} parent=1 // pred_check_branch
      %65 = sbr.rel (0) target = $region25
    $region24: #{tpu_custom_call.1} parent=1 // pred_region
      %66 = dma.done [#allocation6], 256
    $region25: #{tpu_custom_call.1} parent=1 // pred_fallthru
      _
    // Predicated region
    $region26: #{tpu_custom_call.1} parent=1 // pred_check
      _
    $region27: #{tpu_custom_call.1} parent=1 // pred_check_branch
      %68 = sbr.rel (0) target = $region29
    $region28: #{tpu_custom_call.1} parent=1 // pred_region
      %69 = dma.done [#allocation6], 256
    $region29: #{tpu_custom_call.1} parent=1 // pred_fallthru
      _
    // Predicated region
    $region30: #{tpu_custom_call.1} parent=1 // pred_check
      _
    $region31: #{tpu_custom_call.1} parent=1 // pred_check_branch
      %71 = sbr.rel (0) target = $region33
    $region32: #{tpu_custom_call.1} parent=1 // pred_region
      %72 = dma.done [#allocation9], 256
    $region33: #{tpu_custom_call.1} parent=1 // pred_fallthru
      _
    %v73 = vld [vmem:[#allocation2] sm:$0xff]
    %v74 = vld [vmem:[#allocation2 + $0x8] sm:$0xff]
    %v75 = vld [vmem:[#allocation2 + $0x10] sm:$0xff]
    %v76 = vld [vmem:[#allocation2 + $0x18] sm:$0xff]
    %v77 = vld [vmem:[#allocation2 + $0x20] sm:$0xff]
    %v78 = vld [vmem:[#allocation2 + $0x28] sm:$0xff]
    %v79 = vld [vmem:[#allocation2 + $0x30] sm:$0xff]
    %v80 = vld [vmem:[#allocation2 + $0x38] sm:$0xff]
    %v81 = vld [vmem:[#allocation2 + $0x40] sm:$0xff]
    %v82 = vld [vmem:[#allocation2 + $0x48] sm:$0xff]
    %v83 = vld [vmem:[#allocation2 + $0x50] sm:$0xff]
    %v84 = vld [vmem:[#allocation2 + $0x58] sm:$0xff]
    %v85 = vld [vmem:[#allocation2 + $0x60] sm:$0xff]
    %v86 = vld [vmem:[#allocation2 + $0x68] sm:$0xff]
    %v87 = vld [vmem:[#allocation2 + $0x70] sm:$0xff]
    %v88 = vld [vmem:[#allocation2 + $0x78] sm:$0xff]
    %89 = vrot.lane.b32.xlu0 %v73, 127
    %v90 = vpop.permute.xlu0 %89
    %91 = vrot.lane.b32.xlu0 %v74, 127
    %v92 = vpop.permute.xlu0 %91
    %93 = vrot.lane.b32.xlu0 %v75, 127
    %v94 = vpop.permute.xlu0 %93
    %95 = vrot.lane.b32.xlu0 %v76, 127
    %v96 = vpop.permute.xlu0 %95
    %97 = vrot.lane.b32.xlu0 %v77, 127
    %v98 = vpop.permute.xlu0 %97
    %99 = vrot.lane.b32.xlu0 %v78, 127
    %v100 = vpop.permute.xlu0 %99
    %101 = vrot.lane.b32.xlu0 %v79, 127
    %v102 = vpop.permute.xlu0 %101
    %103 = vrot.lane.b32.xlu0 %v80, 127
    %v104 = vpop.permute.xlu0 %103
    %105 = vrot.lane.b32.xlu0 %v81, 127
    %v106 = vpop.permute.xlu0 %105
    %107 = vrot.lane.b32.xlu0 %v82, 127
    %v108 = vpop.permute.xlu0 %107
    %109 = vrot.lane.b32.xlu0 %v83, 127
    %v110 = vpop.permute.xlu0 %109
    %111 = vrot.lane.b32.xlu0 %v84, 127
    %v112 = vpop.permute.xlu0 %111
    %113 = vrot.lane.b32.xlu0 %v85, 127
    %v114 = vpop.permute.xlu0 %113
    %115 = vrot.lane.b32.xlu0 %v86, 127
    %v116 = vpop.permute.xlu0 %115
    %117 = vrot.lane.b32.xlu0 %v87, 127
    %v118 = vpop.permute.xlu0 %117
    %119 = vrot.lane.b32.xlu0 %v88, 127
    %v120 = vpop.permute.xlu0 %119
    %121 = vrot.lane.b32.xlu0 %v73, 1
    %v122 = vpop.permute.xlu0 %121
    %123 = vrot.lane.b32.xlu0 %v74, 1
    %v124 = vpop.permute.xlu0 %123
    %125 = vrot.lane.b32.xlu0 %v75, 1
    %v126 = vpop.permute.xlu0 %125
    %127 = vrot.lane.b32.xlu0 %v76, 1
    %v128 = vpop.permute.xlu0 %127
    %129 = vrot.lane.b32.xlu0 %v77, 1
    %v130 = vpop.permute.xlu0 %129
    %131 = vrot.lane.b32.xlu0 %v78, 1
    %v132 = vpop.permute.xlu0 %131
    %133 = vrot.lane.b32.xlu0 %v79, 1
    %v134 = vpop.permute.xlu0 %133
    %135 = vrot.lane.b32.xlu0 %v80, 1
    %v136 = vpop.permute.xlu0 %135
    %137 = vrot.lane.b32.xlu0 %v81, 1
    %v138 = vpop.permute.xlu0 %137
    %139 = vrot.lane.b32.xlu0 %v82, 1
    %v140 = vpop.permute.xlu0 %139
    %141 = vrot.lane.b32.xlu0 %v83, 1
    %v142 = vpop.permute.xlu0 %141
    %143 = vrot.lane.b32.xlu0 %v84, 1
    %v144 = vpop.permute.xlu0 %143
    %145 = vrot.lane.b32.xlu0 %v85, 1
    %v146 = vpop.permute.xlu0 %145
    %147 = vrot.lane.b32.xlu0 %v86, 1
    %v148 = vpop.permute.xlu0 %147
    %149 = vrot.lane.b32.xlu0 %v87, 1
    %v150 = vpop.permute.xlu0 %149
    %151 = vrot.lane.b32.xlu0 %v88, 1
    %v152 = vpop.permute.xlu0 %151
    %v153 = vld [vmem:[#allocation5] sm:$0xff]
    %v154 = vld [vmem:[#allocation5 + $0x8] sm:$0xff]
    %v155 = vmul.f32 %v73, %v153
    %v156 = vmul.f32 %v74, %v154
    %v157 = vmul.f32 %v75, %v153
    %v158 = vmul.f32 %v76, %v154
    %v159 = vmul.f32 %v77, %v153
    %v160 = vmul.f32 %v78, %v154
    %v161 = vmul.f32 %v79, %v153
    %v162 = vmul.f32 %v80, %v154
    %v163 = vmul.f32 %v81, %v153
    %v164 = vmul.f32 %v82, %v154
    %v165 = vmul.f32 %v83, %v153
    %v166 = vmul.f32 %v84, %v154
    %v167 = vmul.f32 %v85, %v153
    %v168 = vmul.f32 %v86, %v154
    %v169 = vmul.f32 %v87, %v153
    %v170 = vmul.f32 %v88, %v154
    %v171 = vld [vmem:[#allocation7] sm:$0xff]
    %v172 = vld [vmem:[#allocation7 + $0x8] sm:$0xff]
    %v173 = vmul.f32 %v90, %v171
    %v174 = vmul.f32 %v92, %v172
    %v175 = vmul.f32 %v94, %v171
    %v176 = vmul.f32 %v96, %v172
    %v177 = vmul.f32 %v98, %v171
    %v178 = vmul.f32 %v100, %v172
    %v179 = vmul.f32 %v102, %v171
    %v180 = vmul.f32 %v104, %v172
    %v181 = vmul.f32 %v106, %v171
    %v182 = vmul.f32 %v108, %v172
    %v183 = vmul.f32 %v110, %v171
    %v184 = vmul.f32 %v112, %v172
    %v185 = vmul.f32 %v114, %v171
    %v186 = vmul.f32 %v116, %v172
    %v187 = vmul.f32 %v118, %v171
    %v188 = vmul.f32 %v120, %v172
    %v189 = vadd.f32 %v155, %v173
    %v190 = vadd.f32 %v156, %v174
    %v191 = vadd.f32 %v157, %v175
    %v192 = vadd.f32 %v158, %v176
    %v193 = vadd.f32 %v159, %v177
    %v194 = vadd.f32 %v160, %v178
    %v195 = vadd.f32 %v161, %v179
    %v196 = vadd.f32 %v162, %v180
    %v197 = vadd.f32 %v163, %v181
    %v198 = vadd.f32 %v164, %v182
    %v199 = vadd.f32 %v165, %v183
    %v200 = vadd.f32 %v166, %v184
    %v201 = vadd.f32 %v167, %v185
    %v202 = vadd.f32 %v168, %v186
    %v203 = vadd.f32 %v169, %v187
    %v204 = vadd.f32 %v170, %v188
    %v205 = vld [vmem:[#allocation8] sm:$0xff]
    %v206 = vld [vmem:[#allocation8 + $0x8] sm:$0xff]
    %v207 = vmul.f32 %v122, %v205
    %v208 = vmul.f32 %v124, %v206
    %v209 = vmul.f32 %v126, %v205
    %v210 = vmul.f32 %v128, %v206
    %v211 = vmul.f32 %v130, %v205
    %v212 = vmul.f32 %v132, %v206
    %v213 = vmul.f32 %v134, %v205
    %v214 = vmul.f32 %v136, %v206
    %v215 = vmul.f32 %v138, %v205
    %v216 = vmul.f32 %v140, %v206
    %v217 = vmul.f32 %v142, %v205
    %v218 = vmul.f32 %v144, %v206
    %v219 = vmul.f32 %v146, %v205
    %v220 = vmul.f32 %v148, %v206
    %v221 = vmul.f32 %v150, %v205
    %v222 = vmul.f32 %v152, %v206
    %v223 = vadd.f32 %v189, %v207
    %v224 = vadd.f32 %v190, %v208
    %v225 = vadd.f32 %v191, %v209
    %v226 = vadd.f32 %v192, %v210
    %v227 = vadd.f32 %v193, %v211
    %v228 = vadd.f32 %v194, %v212
    %v229 = vadd.f32 %v195, %v213
    %v230 = vadd.f32 %v196, %v214
    %v231 = vadd.f32 %v197, %v215
    %v232 = vadd.f32 %v198, %v216
    %v233 = vadd.f32 %v199, %v217
    %v234 = vadd.f32 %v200, %v218
    %v235 = vadd.f32 %v201, %v219
    %v236 = vadd.f32 %v202, %v220
    %v237 = vadd.f32 %v203, %v221
    %v238 = vadd.f32 %v204, %v222
    %239 = vst [vmem:[#allocation10] sm:$0xff] %v223
    %240 = vst [vmem:[#allocation10 + $0x8] sm:$0xff] %v224
    %241 = vst [vmem:[#allocation10 + $0x10] sm:$0xff] %v225
    %242 = vst [vmem:[#allocation10 + $0x18] sm:$0xff] %v226
    %243 = vst [vmem:[#allocation10 + $0x20] sm:$0xff] %v227
    %244 = vst [vmem:[#allocation10 + $0x28] sm:$0xff] %v228
    %245 = vst [vmem:[#allocation10 + $0x30] sm:$0xff] %v229
    %246 = vst [vmem:[#allocation10 + $0x38] sm:$0xff] %v230
    %247 = vst [vmem:[#allocation10 + $0x40] sm:$0xff] %v231
    %248 = vst [vmem:[#allocation10 + $0x48] sm:$0xff] %v232
    %249 = vst [vmem:[#allocation10 + $0x50] sm:$0xff] %v233
    %250 = vst [vmem:[#allocation10 + $0x58] sm:$0xff] %v234
    %251 = vst [vmem:[#allocation10 + $0x60] sm:$0xff] %v235
    %252 = vst [vmem:[#allocation10 + $0x68] sm:$0xff] %v236
    %253 = vst [vmem:[#allocation10 + $0x70] sm:$0xff] %v237
    %254 = vst [vmem:[#allocation10 + $0x78] sm:$0xff] %v238
    // Predicated region
    $region34: #{tpu_custom_call.1} parent=1 // pred_check
      _
    $region35: #{tpu_custom_call.1} parent=1 // pred_check_branch
      %256 = sbr.rel (0) target = $region37
    $region36: #{tpu_custom_call.1} parent=1 // pred_region
      %s258 = ssub.s32 2048, 2048
      %259 = vsyncadd [#allocation4], %s258
      %s260 = sshll.u32 [#allocation10], 4
      %s261 = int_to_ptr.vmem [resolvable:$true] %s260
      %266 = dma.vmem_to_hbm [thread:$0]  %s261, 2048, %s4, [#allocation4], 128, 128, 8
    $region37: #{tpu_custom_call.1} parent=1 // pred_fallthru
      _
    // Predicated region
    $region38: #{tpu_custom_call.1} parent=1 // pred_check
      _
    $region39: #{tpu_custom_call.1} parent=1 // pred_check_branch
      %268 = sbr.rel (0) target = $region41
    $region40: #{tpu_custom_call.1} parent=1 // pred_region
      %269 = dma.done [#allocation4], 2048
    $region41: #{tpu_custom_call.1} parent=1 // pred_fallthru
      _
    %270 = vsyncpa [#allocation3], 1
    %271 = vsyncpa [#allocation6], 1
    %272 = vsyncpa [#allocation9], 1
    %273 = vsyncpa [#allocation4], 1

</llo_original>
